<compile_context>
chip_gen: v5e
topology: v5e:2x2
jax: 0.10.0
libtpu: 0.0.40
codegen_flags: <defaults>
</compile_context>

<pallas_src>
import numpy as np
import jax
import jax.numpy as jnp
from jax.experimental import pallas as pl
from jax.experimental.pallas import tpu as pltpu


# ----------------------------- kernels ------------------------------------ #

def _periodic_cov_kernel(params_ref, f1_ref, f2t_ref, out_ref):
    """Full covariance tile via feature matmul.

    params_ref : SMEM (2,)  [inv_ls2, const]   const = -D*inv_ls2 + log(scale^2)
    f1_ref     : VMEM (tm, Kp)   [cos(w*x1), sin(w*x1)] (zero-padded features)
    f2t_ref    : VMEM (Kp, tn)   [cos(w*x2), sin(w*x2)]^T
    out_ref    : VMEM (tm, tn)   (edge blocks store-masked by Pallas)
    """
    inv_ls2 = params_ref[0]
    const = params_ref[1]
    dotv = jnp.dot(f1_ref[...], f2t_ref[...],
                   preferred_element_type=jnp.float32)        # MXU, K = 2D (padded)
    out_ref[...] = jnp.exp(dotv * inv_ls2 + const)             # EUP


def _periodic_diag_kernel(params_ref, x1t_ref, x2t_ref, out_ref):
    """Diagonal covariance, lane-dense along N.

    params_ref     : SMEM (3,)  [omega, inv_ls2, const]  const = -Dp*inv_ls2 + log(scale^2)
    x1t_ref/x2t_ref: VMEM (Dp, tn)   (inputs transposed; Dp = D padded to 8 with zeros)
    out_ref        : VMEM (1, tn)
    """
    omega = params_ref[0]
    inv_ls2 = params_ref[1]
    const = params_ref[2]
    cosv = jnp.cos(omega * (x1t_ref[...] - x2t_ref[...]))      # (Dp, tn)
    sum_cos = jnp.sum(cosv, axis=0, keepdims=True)             # sublane reduce -> (1, tn)
    out_ref[...] = jnp.exp(sum_cos * inv_ls2 + const)


# ----------------------------- helpers ------------------------------------ #

def _round_up(x, m):
    return ((x + m - 1) // m) * m


def _split_tile(tile, align):
    """Roughly halve a tile while keeping `align`-alignment (for megacore).

    Returns the original tile if it cannot be shrunk (already == align)."""
    new = _round_up(tile // 2, align)
    return new if 0 < new < tile else tile


# ----------------------------- wrapper ------------------------------------ #

class PeriodicKernelPallas:
    """Pallas TPU implementation of sgpvae PeriodicKernel.forward."""

    # Tile caps: 512x2048 f32 output tile = 4 MiB, x2 double-buffered = 8 MiB,
    # safely under the scoped-VMEM limit on v5e/v6e/v7x while keeping stores
    # unmasked (for aligned shapes) and per-grid-step overhead amortized.
    _TM_MAX = 512        # rows of x1 per tile (sublane-aligned)
    _TN_MAX = 2048       # cols of x2 per tile (lane-aligned)
    _TN_DIAG_MAX = 16384 # diag lanes per tile: (8, 16384) f32 = 0.5 MiB/input
    _VMEM_LIMIT = 32 * 1024 * 1024

    def __init__(self, lengthscale=1.0, period=1.0, scale=1.0):
        # Deterministic parameter init (matches the nn.Parameter defaults).
        self.lengthscale = jnp.float32(lengthscale)
        self.scale = jnp.float32(scale)
        self.raw_period = jnp.log(jnp.float32(period))

    def __call__(self, x1, x2, diag=False):
        # Mirror the torch unsqueeze on 1-D inputs.
        x1 = x1[:, None] if x1.ndim == 1 else x1
        x2 = x2[:, None] if x2.ndim == 1 else x2
        assert x1.shape[-1] == x2.shape[-1], "Inputs are different dimensions."
        x1 = x1.astype(jnp.float32)
        x2 = x2.astype(jnp.float32)

        period = jnp.exp(self.raw_period)
        omega = jnp.float32(2.0 * np.pi) / period              # 2*pi/p
        inv_ls2 = 1.0 / (self.lengthscale * self.lengthscale)
        log_scale2 = jnp.log(self.scale * self.scale)

        if diag:
            assert x1.shape == x2.shape, "Inputs must be the same shape."
            return self._diag(x1, x2, omega, inv_ls2, log_scale2)
        return self._full(x1, x2, omega, inv_ls2, log_scale2)

    # -- full covariance: (N1, N2) -- #
    def _full(self, x1, x2, omega, inv_ls2, log_scale2):
        n1, d = x1.shape
        n2 = x2.shape[0]

        k = 2 * d
        kp = _round_up(k, 8)                                    # pad contraction dim only to 8

        tm = min(_round_up(n1, 8), self._TM_MAX)
        tn = min(_round_up(n2, 128), self._TN_MAX)

        # v7x megacore: ensure >= 2 parallel grid iterations when possible so
        # both TensorCores are used (single-iteration grids leave one TC idle).
        if pl.cdiv(n1, tm) * pl.cdiv(n2, tn) == 1:
            new_tn = _split_tile(tn, 128)
            if new_tn < tn:
                tn = new_tn
            else:
                tm = _split_tile(tm, 8)

        g0 = pl.cdiv(n1, tm)
        g1 = pl.cdiv(n2, tn)
        n1p = g0 * tm
        n2p = g1 * tn

        # Trig features (cheap, O((N1+N2)*D) transcendentals).
        w1 = omega * x1
        w2 = omega * x2
        f1 = jnp.concatenate([jnp.cos(w1), jnp.sin(w1)], axis=-1)      # (N1, 2D)
        f2 = jnp.concatenate([jnp.cos(w2), jnp.sin(w2)], axis=-1)      # (N2, 2D)

        # Zero-pad inputs to grid*block so edge-block reads are defined;
        # zero feature columns/rows contribute 0 to the dot product.
        f1 = jnp.pad(f1, ((0, n1p - n1), (0, kp - k)))                 # (N1p, Kp)
        f2t = jnp.pad(f2, ((0, n2p - n2), (0, kp - k))).T              # (Kp, N2p), lane-dense

        # const = -D*inv_ls2 + log(scale^2)  (true D: padded features add 0 to dot)
        params = jnp.stack([inv_ls2, -jnp.float32(d) * inv_ls2 + log_scale2])

        out = pl.pallas_call(
            _periodic_cov_kernel,
            out_shape=jax.ShapeDtypeStruct((n1, n2), jnp.float32),     # no output padding
            grid_spec=pl.GridSpec(
                grid=(g0, g1),
                in_specs=[
                    pl.BlockSpec(memory_space=pltpu.MemorySpace.SMEM),
                    pl.BlockSpec((tm, kp), lambda i, j: (i, 0)),
                    pl.BlockSpec((kp, tn), lambda i, j: (0, j)),
                ],
                out_specs=pl.BlockSpec((tm, tn), lambda i, j: (i, j)),
            ),
            compiler_params=pltpu.CompilerParams(
                dimension_semantics=("parallel", "parallel"),
                vmem_limit_bytes=self._VMEM_LIMIT,
            ),
            cost_estimate=pl.CostEstimate(
                flops=2 * n1p * n2p * kp,
                transcendentals=n1p * n2p,
                bytes_accessed=4 * (n1 * n2 + n1p * kp + n2p * kp),
            ),
        )(params, f1, f2t)
        return out

    # -- diagonal: (N,) -- #
    def _diag(self, x1, x2, omega, inv_ls2, log_scale2):
        n, d = x1.shape
        dp = _round_up(d, 8)

        tn = min(_round_up(n, 128), self._TN_DIAG_MAX)
        # v7x megacore: split a single-iteration grid when possible.
        if pl.cdiv(n, tn) == 1:
            tn = _split_tile(tn, 128)
        g = pl.cdiv(n, tn)
        n_pad = g * tn

        # (D, N) layout: lane-dense along N, reduce over D on the sublane axis.
        x1t = jnp.pad(x1, ((0, n_pad - n), (0, dp - d))).T             # (Dp, Np)
        x2t = jnp.pad(x2, ((0, n_pad - n), (0, dp - d))).T

        # Padded feature rows give cos(0)=1; using Dp in the constant cancels them.
        params = jnp.stack([omega, inv_ls2,
                            -jnp.float32(dp) * inv_ls2 + log_scale2])

        out = pl.pallas_call(
            _periodic_diag_kernel,
            out_shape=jax.ShapeDtypeStruct((1, n), jnp.float32),       # no output padding
            grid_spec=pl.GridSpec(
                grid=(g,),
                in_specs=[
                    pl.BlockSpec(memory_space=pltpu.MemorySpace.SMEM),
                    pl.BlockSpec((dp, tn), lambda i: (0, i)),
                    pl.BlockSpec((dp, tn), lambda i: (0, i)),
                ],
                out_specs=pl.BlockSpec((1, tn), lambda i: (0, i)),
            ),
            compiler_params=pltpu.CompilerParams(
                dimension_semantics=("parallel",),
                vmem_limit_bytes=self._VMEM_LIMIT,
            ),
            cost_estimate=pl.CostEstimate(
                flops=4 * dp * n_pad,
                transcendentals=(dp + 1) * n_pad,
                bytes_accessed=4 * (2 * dp * n_pad + n),
            ),
        )(params, x1t, x2t)
        return out[0]


# --------------------------- reference (plain JAX) ------------------------- #

def _reference(x1, x2, lengthscale, period, scale, diag=False):
    x1 = x1[:, None] if x1.ndim == 1 else x1
    x2 = x2[:, None] if x2.ndim == 1 else x2
    if not diag:
        x1 = x1[:, None, :]
        x2 = x2[None, :, :]
    ad = jnp.abs(x1 - x2)
    ad_ = 2.0 * jnp.sin(jnp.pi * ad / period) ** 2
    ad_ = jnp.sum(ad_ / lengthscale ** 2, axis=-1)
    return scale ** 2 * jnp.exp(-ad_)


# ------------------------------ main --------------------------------------- #

if __name__ == "__main__":
    key = jax.random.PRNGKey(0)
    k1, k2, k3, k4, k5, k6 = jax.random.split(key, 6)

    kern = PeriodicKernelPallas(lengthscale=1.3, period=0.7, scale=1.1)

    # --- aligned shapes: full covariance + diag ---
    N1, N2, D = 128, 128, 3
    x1 = jax.random.normal(k1, (N1, D), dtype=jnp.float32)
    x2 = jax.random.normal(k2, (N2, D), dtype=jnp.float32)

    cov = jax.block_until_ready(kern(x1, x2))
    ref = _reference(x1, x2, 1.3, 0.7, 1.1, diag=False)
    np.testing.assert_allclose(np.asarray(cov), np.asarray(ref),
                               rtol=5e-5, atol=5e-5)

    diag_cov = jax.block_until_ready(kern(x1, x1, diag=True))
    ref_diag = _reference(x1, x1, 1.3, 0.7, 1.1, diag=True)
    np.testing.assert_allclose(np.asarray(diag_cov), np.asarray(ref_diag),
                               rtol=5e-5, atol=5e-5)

    # --- unaligned shapes (exercise padding / cdiv grid / masked edge stores) ---
    M1, M2, D2 = 77, 53, 2
    y1 = jax.random.normal(k3, (M1, D2), dtype=jnp.float32)
    y2 = jax.random.normal(k4, (M2, D2), dtype=jnp.float32)

    cov2 = jax.block_until_ready(kern(y1, y2))
    ref2 = _reference(y1, y2, 1.3, 0.7, 1.1, diag=False)
    np.testing.assert_allclose(np.asarray(cov2), np.asarray(ref2),
                               rtol=5e-5, atol=5e-5)

    diag2 = jax.block_until_ready(kern(y1, y1, diag=True))
    ref_d2 = _reference(y1, y1, 1.3, 0.7, 1.1, diag=True)
    np.testing.assert_allclose(np.asarray(diag2), np.asarray(ref_d2),
                               rtol=5e-5, atol=5e-5)

    # --- unaligned, multi-block grid with megacore split ---
    P1, P2, D3 = 300, 250, 4
    z1 = jax.random.normal(k5, (P1, D3), dtype=jnp.float32)
    z2 = jax.random.normal(k6, (P2, D3), dtype=jnp.float32)

    cov3 = jax.block_until_ready(kern(z1, z2))
    ref3 = _reference(z1, z2, 1.3, 0.7, 1.1, diag=False)
    np.testing.assert_allclose(np.asarray(cov3), np.asarray(ref3),
                               rtol=5e-5, atol=5e-5)

    diag3 = jax.block_until_ready(kern(z1, z1, diag=True))
    ref_d3 = _reference(z1, z1, 1.3, 0.7, 1.1, diag=True)
    np.testing.assert_allclose(np.asarray(diag3), np.asarray(ref_d3),
                               rtol=5e-5, atol=5e-5)

    print("KERNEL_OK")
</pallas_src>

<mosaic_0001>
module attributes {stable_mosaic.version = 11 : i64} {
  func.func @_periodic_cov_kernel(%arg0: i32, %arg1: i32, %arg2: memref<2xf32, #tpu.memory_space<smem>>, %arg3: memref<64x8xf32, #tpu.memory_space<vmem>>, %arg4: memref<8x128xf32, #tpu.memory_space<vmem>>, %arg5: memref<64x128xf32, #tpu.memory_space<vmem>>) attributes {dimension_semantics = [#tpu.dimension_semantics<parallel>, #tpu.dimension_semantics<parallel>], iteration_bounds = array<i64: 2, 1>, scalar_prefetch = 0 : i64, scratch_operands = 0 : i64, tpu.core_type = #tpu.core_type<tc>, window_params = [{transform_indices = @transform_0, window_bounds = array<i64: 2>}, {transform_indices = @transform_1, window_bounds = array<i64: 64, 8>}, {transform_indices = @transform_2, window_bounds = array<i64: 8, 128>}, {transform_indices = @transform_3, window_bounds = array<i64: 64, 128>}]} {
    %c0 = arith.constant 0 : index
    %0 = memref.load %arg2[%c0] : memref<2xf32, #tpu.memory_space<smem>>
    %c1 = arith.constant 1 : index
    %1 = memref.load %arg2[%c1] : memref<2xf32, #tpu.memory_space<smem>>
    %c0_0 = arith.constant 0 : index
    %c0_1 = arith.constant 0 : index
    %2 = vector.load %arg3[%c0_0, %c0_1] : memref<64x8xf32, #tpu.memory_space<vmem>>, vector<64x8xf32>
    %c0_2 = arith.constant 0 : index
    %c0_3 = arith.constant 0 : index
    %3 = vector.load %arg4[%c0_2, %c0_3] : memref<8x128xf32, #tpu.memory_space<vmem>>, vector<8x128xf32>
    %cst = arith.constant dense<0.000000e+00> : vector<64x128xf32>
    %4 = tpu.matmul %2, %3, %cst {dimension_numbers = #tpu.dot_dimension_numbers<[1], [0], [0], [1], [0, 0, 1, 1], [], []>} : vector<64x8xf32>, vector<8x128xf32>, vector<64x128xf32> -> vector<64x128xf32>
    %5 = vector.broadcast %0 : f32 to vector<64x128xf32>
    %6 = arith.mulf %4, %5 : vector<64x128xf32>
    %7 = vector.broadcast %1 : f32 to vector<64x128xf32>
    %8 = arith.addf %6, %7 : vector<64x128xf32>
    %9 = math.exp %8 : vector<64x128xf32>
    %c0_4 = arith.constant 0 : index
    %c0_5 = arith.constant 0 : index
    %10 = vector.load %arg5[%c0_4, %c0_5] : memref<64x128xf32, #tpu.memory_space<vmem>>, vector<64x128xf32>
    tpu.vector_store %arg5[%c0_4, %c0_5], %9 {strides = array<i32>} : memref<64x128xf32, #tpu.memory_space<vmem>>, vector<64x128xf32>,
    return
  }
  func.func @transform_0(%arg0: i32, %arg1: i32) -> i32 {
    %c0_i32 = arith.constant 0 : i32
    %c0_i32_0 = arith.constant 0 : i32
    return %c0_i32 : i32
  }
  func.func @transform_1(%arg0: i32, %arg1: i32) -> (i32, i32) {
    %c0_i32 = arith.constant 0 : i32
    %c0_i32_0 = arith.constant 0 : i32
    return %arg0, %c0_i32 : i32, i32
  }
  func.func @transform_2(%arg0: i32, %arg1: i32) -> (i32, i32) {
    %c0_i32 = arith.constant 0 : i32
    %c0_i32_0 = arith.constant 0 : i32
    return %c0_i32, %arg1 : i32, i32
  }
  func.func @transform_3(%arg0: i32, %arg1: i32) -> (i32, i32) {
    %c0_i32 = arith.constant 0 : i32
    return %arg0, %arg1 : i32, i32
  }
}

</mosaic_0001>

<llo_original>
// kernel: tpu_custom_call.1
$region0: #{tpu_custom_call.1}
  #allocation0 [shape = 'u32[]', space=smem, size = 0x4, offset = 0x4, fixed_abs, tag = 'smem constant byte address 0x4 - core index']
  #allocation1 [shape = 'u32[72,128]{1,0:T(1,128)}', space=vmem, size = 0x9000, scoped, tag = 'internal scratch']
  %s0 = inlined_call_operand.vmem [shape: f32[2], index: 0, kind: input, shape index: {}]
  %s1 = inlined_call_operand.vmem [shape: f32[128,8], index: 1, kind: input, shape index: {}]
  %s2 = inlined_call_operand.vmem [shape: f32[8,128], index: 2, kind: input, shape index: {}]
  %s3 = inlined_call_operand.hbm [shape: f32[128,128], index: 3, kind: output, shape index: {}]
  %s4 = sld [smem:[#allocation0]]
  $region49: #{tpu_custom_call.1} parent=0
    _
  %s6 = ssub.s32 1, %s4
  %s7 = scalar_select 0, %s6, %s4
  $region1: #{tpu_custom_call.1} parent=0
    #allocation2 [shape = 'u8[512]{0}', space=smem, size = 0x200, scoped, tag = 'input window, operand 0, single buffered']
    #allocation3 [shape = 's32[2]{0}', space=sflag, size = 0x8, scoped, tag = 'scoped memory for tpu_custom_call.1']
    #allocation4 [shape = 's32[2]{0}', space=sflag, size = 0x8, scoped, tag = 'scoped memory for tpu_custom_call.1']
    #allocation5 [shape = 'u8[65536]{0}', space=vmem, size = 0x10000, scoped, tag = 'output window, operand 0']
    %8 = vsyncpa [#allocation4], 0
    %9 = vsyncpa [#allocation3], 0
    %s10 = scalar_lea.sflag [#allocation3], 1
    %11 = vsyncpa %s10, 0
    loop: start=0, step=1, limit=4
    $region2: #{tpu_custom_call.1} parent=1 // loop_pre_header
      _
    $region3: #{tpu_custom_call.1} parent=1 // loop_header
      %s13 = sphi 0, %s17
      %p14 = scmp.ge.s32.totalorder %s13, 4
      %s20 = sphi 0, %s32
      %s21 = sphi 0, %s28
      %s22 = sphi 0, %s20
      %s23 = sphi 0, %s21
      %s24 = sphi 0, %s22
      %s25 = sphi 0, %s23
      %s33 = sphi 0, %s33
      %s35 = sphi 0, %s33
      %s36 = sphi 0, %s35
      %s50 = sphi 0, %s36
      %s56 = sphi 0, %s58
      %s59 = sphi 0, %s56
      %s60 = sphi 0, %s59
      %s76 = sphi 0, %s60
      %s82 = sphi 0, %s84
      %s85 = sphi 0, %s82
      %s86 = sphi 0, %s85
      %s102 = sphi 0, %s86
      %s110 = sphi 0, %s112
      %s113 = sphi 0, %s110
      %s114 = sphi 0, %s113
      %s130 = sphi 0, %s114
    $region4: #{tpu_custom_call.1} parent=1 // loop_header_branch
      %16 = sbr.rel (%p14) target = $region8
    $region5: #{tpu_custom_call.1} parent=1 // loop_body
      %s18 = ssub.s32 %s13, 1
      %s19 = ssub.s32 %s13, 2
      %s26 = sadd.s32 1, %s21
      %p27 = scmp.ge.s32.totalorder %s26, 1
      %s28 = scalar_select %p27, 0, %s26
      %s29 = sadd.s32 1, %s20
      %s30 = scalar_select %p27, %s29, %s20
      %p31 = scmp.ge.s32.totalorder %s30, 2
      %s32 = scalar_select %p31, 0, %s30
      %s34 = sadd.s32 %s33, 1
      %p37 = scmp.eq.s32.totalorder %s13, 1
      %p38 = scmp.ne.s32.totalorder %s33, %s35
      %p39 = scmp.eq.s32.totalorder %s13, 0
      %p40 = por %p38, %p39
      %p41 = scmp.ne.s32.totalorder %s33, %s35
      %p42 = scmp.eq.s32.totalorder %s18, 1
      %p43 = por %p41, %p42
      %p44 = scmp.ne.s32.totalorder %s35, %s36
      %p45 = scmp.eq.s32.totalorder %s18, 0
      %p46 = por %p44, %p45
      %p47 = scmp.ne.s32.totalorder %s35, %s36
      %p48 = scmp.eq.s32.totalorder %s19, 1
      %p49 = por %p47, %p48
      %p51 = scmp.ne.s32.totalorder %s36, %s50
      %p52 = scmp.eq.s32.totalorder %s19, 0
      %p53 = por %p51, %p52
      %s54 = ssub.s32 %s20, %s32
      %p55 = scmp.eq.s32.totalorder %s54, 0
      %s57 = sadd.s32 %s56, 1
      %s58 = scalar_select %p55, %s56, %s57
      %p61 = pneg %p55
      %p62 = scmp.eq.s32.totalorder %s13, 1
      %p63 = por %p61, %p62
      %p64 = scmp.ne.s32.totalorder %s56, %s59
      %p65 = scmp.eq.s32.totalorder %s13, 0
      %p66 = por %p64, %p65
      %p67 = scmp.ne.s32.totalorder %s56, %s59
      %p68 = scmp.eq.s32.totalorder %s18, 1
      %p69 = por %p67, %p68
      %p70 = scmp.ne.s32.totalorder %s59, %s60
      %p71 = scmp.eq.s32.totalorder %s18, 0
      %p72 = por %p70, %p71
      %p73 = scmp.ne.s32.totalorder %s59, %s60
      %p74 = scmp.eq.s32.totalorder %s19, 1
      %p75 = por %p73, %p74
      %p77 = scmp.ne.s32.totalorder %s60, %s76
      %p78 = scmp.eq.s32.totalorder %s19, 0
      %p79 = por %p77, %p78
      %s80 = ssub.s32 %s21, %s28
      %p81 = scmp.eq.s32.totalorder %s80, 0
      %s83 = sadd.s32 %s82, 1
      %s84 = scalar_select %p81, %s82, %s83
      %p87 = pneg %p81
      %p88 = scmp.eq.s32.totalorder %s13, 1
      %p89 = por %p87, %p88
      %p90 = scmp.ne.s32.totalorder %s82, %s85
      %p91 = scmp.eq.s32.totalorder %s13, 0
      %p92 = por %p90, %p91
      %p93 = scmp.ne.s32.totalorder %s82, %s85
      %p94 = scmp.eq.s32.totalorder %s18, 1
      %p95 = por %p93, %p94
      %p96 = scmp.ne.s32.totalorder %s85, %s86
      %p97 = scmp.eq.s32.totalorder %s18, 0
      %p98 = por %p96, %p97
      %p99 = scmp.ne.s32.totalorder %s85, %s86
      %p100 = scmp.eq.s32.totalorder %s19, 1
      %p101 = por %p99, %p100
      %p103 = scmp.ne.s32.totalorder %s86, %s102
      %p104 = scmp.eq.s32.totalorder %s19, 0
      %p105 = por %p103, %p104
      %s106 = ssub.s32 %s20, %s32
      %s107 = ssub.s32 %s21, %s28
      %s108 = sor.u32 %s106, %s107
      %p109 = scmp.eq.s32.totalorder %s108, 0
      %s111 = sadd.s32 %s110, 1
      %s112 = scalar_select %p109, %s110, %s111
      %p115 = pneg %p109
      %p116 = scmp.eq.s32.totalorder %s13, 1
      %p117 = por %p115, %p116
      %p118 = scmp.ne.s32.totalorder %s110, %s113
      %p119 = scmp.eq.s32.totalorder %s13, 0
      %p120 = por %p118, %p119
      %p121 = scmp.ne.s32.totalorder %s110, %s113
      %p122 = scmp.eq.s32.totalorder %s18, 1
      %p123 = por %p121, %p122
      %p124 = scmp.ne.s32.totalorder %s113, %s114
      %p125 = scmp.eq.s32.totalorder %s18, 0
      %p126 = por %p124, %p125
      %p127 = scmp.ne.s32.totalorder %s113, %s114
      %p128 = scmp.eq.s32.totalorder %s19, 1
      %p129 = por %p127, %p128
      %p131 = scmp.ne.s32.totalorder %s114, %s130
      %p132 = scmp.eq.s32.totalorder %s19, 0
      %p133 = por %p131, %p132
      %p134 = scmp.le.s32.totalorder 1, %s13
      %p135 = scmp.lt.s32.totalorder %s13, 3
      %p136 = pnand %p134, %p135
      %p137 = pneg %p136
      // Predicated region
      $region9: #{tpu_custom_call.1} parent=5 // pred_check
        _
      $region10: #{tpu_custom_call.1} parent=5 // pred_check_branch
        %139 = sbr.rel (%p136) target = $region12
      $region11: #{tpu_custom_call.1} parent=5 // pred_region
        %s140 = ssub.s32 %s13, 1
        // Predicated region
        $region13: #{tpu_custom_call.1} parent=11 // pred_check
          %p141 = pneg %p46
        $region14: #{tpu_custom_call.1} parent=11 // pred_check_branch
          %143 = sbr.rel (%p141) target = $region16
        $region15: #{tpu_custom_call.1} parent=11 // pred_region
          %145 = vsyncadd [#allocation4], 0
          %s147 = sshll.u32 %s0, 4
          %s148 = int_to_ptr.vmem [resolvable:$true] %s147
          %150 = dma.vmem_to_smem %s148, 16, [#allocation2], [#allocation4]
        $region16: #{tpu_custom_call.1} parent=11 // pred_fallthru
          _
        // Predicated region
        $region17: #{tpu_custom_call.1} parent=11 // pred_check
          %p151 = pneg %p98
        $region18: #{tpu_custom_call.1} parent=11 // pred_check_branch
          %153 = sbr.rel (%p151) target = $region20
        $region19: #{tpu_custom_call.1} parent=11 // pred_region
          %p154 = scmp.lt.s32.totalorder %s23, 0
          %s155 = scalar_select %p154, %s23, 0
          %s156 = smul.addr %s155, 8
          %s157 = scalar_lea.vmem %s2, %s156
        $region20: #{tpu_custom_call.1} parent=11 // pred_fallthru
          _
      $region12: #{tpu_custom_call.1} parent=5 // pred_fallthru
        _
      %p158 = scmp.lt.s32.totalorder %s13, 2
      // Predicated region
      $region21: #{tpu_custom_call.1} parent=5 // pred_check
        %p159 = pneg %p158
      $region22: #{tpu_custom_call.1} parent=5 // pred_check_branch
        %161 = sbr.rel (%p159) target = $region24
      $region23: #{tpu_custom_call.1} parent=5 // pred_region
        // Predicated region
        $region25: #{tpu_custom_call.1} parent=23 // pred_check
          %p162 = pneg %p66
        $region26: #{tpu_custom_call.1} parent=23 // pred_check_branch
          %164 = sbr.rel (%p162) target = $region28
        $region27: #{tpu_custom_call.1} parent=23 // pred_region
          %s165 = smul.u32 8, %s20
          %p166 = scmp.lt.s32.totalorder %s165, 15
          %s167 = scalar_select %p166, %s165, 15
          %s168 = smul.addr %s167, 8
          %s169 = scalar_lea.vmem %s1, %s168
          %s170 = smul.u32 8, %s20
        $region28: #{tpu_custom_call.1} parent=23 // pred_fallthru
          _
      $region24: #{tpu_custom_call.1} parent=5 // pred_fallthru
        _
      %p171 = scmp.le.s32.totalorder 1, %s13
      %p172 = scmp.lt.s32.totalorder %s13, 3
      %p173 = pnand %p171, %p172
      %p174 = pneg %p173
      // Predicated region
      $region29: #{tpu_custom_call.1} parent=5 // pred_check
        _
      $region30: #{tpu_custom_call.1} parent=5 // pred_check_branch
        %176 = sbr.rel (%p173) target = $region32
      $region31: #{tpu_custom_call.1} parent=5 // pred_region
        %s177 = ssub.s32 %s13, 1
        // Predicated region
        $region33: #{tpu_custom_call.1} parent=31 // pred_check
          %p178 = pneg %p46
        $region34: #{tpu_custom_call.1} parent=31 // pred_check_branch
          %180 = sbr.rel (%p178) target = $region36
        $region35: #{tpu_custom_call.1} parent=31 // pred_region
          %182 = dma.done [#allocation4], 16
        $region36: #{tpu_custom_call.1} parent=31 // pred_fallthru
          _
        %183 = sfence
        %p184 = pneg %p46
        %p185 = pneg %p43
        %s186 = smul.u32 8, %s22
        %p187 = scmp.lt.s32.totalorder %s186, 15
        %s188 = scalar_select %p187, %s186, 15
        %s189 = smul.addr %s188, 8
        %s190 = scalar_lea.vmem %s1, %s189
        %p191 = pneg %p72
        %p192 = pneg %p69
        %p193 = scmp.lt.s32.totalorder %s23, 0
        %s194 = scalar_select %p193, %s23, 0
        %s195 = smul.addr %s194, 8
        %s196 = scalar_lea.vmem %s2, %s195
        %p197 = pneg %p98
        %p198 = pneg %p95
        %p199 = pneg %p126
        %p200 = pneg %p123
        %s201 = sand.u32 %s113, 1
        %s202 = scalar_lea.sflag [#allocation3], %s201
        %s203 = sand.u32 %s113, 1
        %s204 = smul.addr %s203, 64
        %s205 = scalar_lea.vmem [#allocation5], %s204
        %s206 = smul.u32 8, %s22
        %p207 = scmp.lt.s32.totalorder %s206, 15
        %s208 = scalar_select %p207, %s206, 15
        %s209 = smul.addr %s208, 8
        %s210 = scalar_lea.vmem %s1, %s209
        %s211 = smul.u32 8, %s22
        %p212 = scmp.lt.s32.totalorder %s23, 0
        %s213 = scalar_select %p212, %s23, 0
        %s214 = smul.addr %s213, 8
        %s215 = scalar_lea.vmem %s2, %s214
        %s216 = smul.u32 8, %s22
        %s217 = sld [smem:[#allocation2]]
        %s218 = sld [smem:[#allocation2 + $0x1]]
        %v219 = vld [vmem:[%s210] sm:$0xff]
        %v220 = vld [vmem:[%s210 + $0x8] sm:$0xff]
        %v221 = vld [vmem:[%s210 + $0x10] sm:$0xff]
        %v222 = vld [vmem:[%s210 + $0x18] sm:$0xff]
        %v223 = vld [vmem:[%s210 + $0x20] sm:$0xff]
        %v224 = vld [vmem:[%s210 + $0x28] sm:$0xff]
        %v225 = vld [vmem:[%s210 + $0x30] sm:$0xff]
        %v226 = vld [vmem:[%s210 + $0x38] sm:$0xff]
        %v227 = vld [vmem:[%s215] sm:$0xff]
        %vm228 = vcmask 64512
        %v230 = vsel %vm228, %v219, 0
        %v233 = vsel %vm228, %v220, 0
        %v236 = vsel %vm228, %v221, 0
        %v239 = vsel %vm228, %v222, 0
        %v242 = vsel %vm228, %v223, 0
        %v245 = vsel %vm228, %v224, 0
        %v248 = vsel %vm228, %v225, 0
        %v251 = vsel %vm228, %v226, 0
        %253 = vmatpush.msra.mxu0 0.0
        %254 = vmatpush.msra.mxu0 0.0
        %255 = vmatpush.msra.mxu0 0.0
        %256 = vmatpush.msra.mxu0 0.0
        %257 = vmatpush.msra.mxu0 0.0
        %258 = vmatpush.msra.mxu0 0.0
        %259 = vmatpush.msra.mxu0 0.0
        %260 = vmatpush.msra.mxu0 0.0
        %261 = vmatpush.msra.mxu0 0.0
        %262 = vmatpush.msra.mxu0 0.0
        %263 = vmatpush.msra.mxu0 0.0
        %264 = vmatpush.msra.mxu0 0.0
        %265 = vmatpush.msra.mxu0 0.0
        %266 = vmatpush.msra.mxu0 0.0
        %267 = vmatpush.msra.mxu0 0.0
        %268 = vmatpush.msra.mxu0 %v227
        %269 = vmatmul.f32.gmra.mxu0 %v230
        %v270 = vpop.f32.mrf.mxu0
        %v271 = vadd.f32 0.0, %v270
        %272 = vmatmul.f32.gmra.mxu0 %v233
        %v273 = vpop.f32.mrf.mxu0
        %v274 = vadd.f32 0.0, %v273
        %275 = vmatmul.f32.gmra.mxu0 %v236
        %v276 = vpop.f32.mrf.mxu0
        %v277 = vadd.f32 0.0, %v276
        %278 = vmatmul.f32.gmra.mxu0 %v239
        %v279 = vpop.f32.mrf.mxu0
        %v280 = vadd.f32 0.0, %v279
        %281 = vmatmul.f32.gmra.mxu0 %v242
        %v282 = vpop.f32.mrf.mxu0
        %v283 = vadd.f32 0.0, %v282
        %284 = vmatmul.f32.gmra.mxu0 %v245
        %v285 = vpop.f32.mrf.mxu0
        %v286 = vadd.f32 0.0, %v285
        %287 = vmatmul.f32.gmra.mxu0 %v248
        %v288 = vpop.f32.mrf.mxu0
        %v289 = vadd.f32 0.0, %v288
        %290 = vmatmul.f32.gmra.mxu0 %v251
        %v291 = vpop.f32.mrf.mxu0
        %v292 = vadd.f32 0.0, %v291
        %293 = vdwg.mxu0
        %v294 = vstv %s217
        %v295 = vmul.f32 %v271, %v294
        %v296 = vmul.f32 %v274, %v294
        %v297 = vmul.f32 %v277, %v294
        %v298 = vmul.f32 %v280, %v294
        %v299 = vmul.f32 %v283, %v294
        %v300 = vmul.f32 %v286, %v294
        %v301 = vmul.f32 %v289, %v294
        %v302 = vmul.f32 %v292, %v294
        %v303 = vstv %s218
        %v304 = vadd.f32 %v295, %v303
        %v305 = vadd.f32 %v296, %v303
        %v306 = vadd.f32 %v297, %v303
        %v307 = vadd.f32 %v298, %v303
        %v308 = vadd.f32 %v299, %v303
        %v309 = vadd.f32 %v300, %v303
        %v310 = vadd.f32 %v301, %v303
        %v311 = vadd.f32 %v302, %v303
        %v312 = vmul.f32 %v304, 1.442695
        %v313 = vpow.pop %v312
        %v314 = vmul.f32 %v305, 1.442695
        %v315 = vpow.pop %v314
        %v316 = vmul.f32 %v306, 1.442695
        %v317 = vpow.pop %v316
        %v318 = vmul.f32 %v307, 1.442695
        %v319 = vpow.pop %v318
        %v320 = vmul.f32 %v308, 1.442695
        %v321 = vpow.pop %v320
        %v322 = vmul.f32 %v309, 1.442695
        %v323 = vpow.pop %v322
        %v324 = vmul.f32 %v310, 1.442695
        %v325 = vpow.pop %v324
        %v326 = vmul.f32 %v311, 1.442695
        %v327 = vpow.pop %v326
        %328 = vst [vmem:[%s205] sm:$0xff] %v313
        %329 = vst [vmem:[%s205 + $0x8] sm:$0xff] %v315
        %330 = vst [vmem:[%s205 + $0x10] sm:$0xff] %v317
        %331 = vst [vmem:[%s205 + $0x18] sm:$0xff] %v319
        %332 = vst [vmem:[%s205 + $0x20] sm:$0xff] %v321
        %333 = vst [vmem:[%s205 + $0x28] sm:$0xff] %v323
        %334 = vst [vmem:[%s205 + $0x30] sm:$0xff] %v325
        %335 = vst [vmem:[%s205 + $0x38] sm:$0xff] %v327
        %s336 = sand.u32 %s113, 1
        %s337 = scalar_lea.sflag [#allocation3], %s336
        %s338 = sand.u32 %s113, 1
        %s339 = smul.addr %s338, 64
        %s340 = scalar_lea.vmem [#allocation5], %s339
        // Predicated region
        $region37: #{tpu_custom_call.1} parent=31 // pred_check
          %p341 = pneg %p123
        $region38: #{tpu_custom_call.1} parent=31 // pred_check_branch
          %343 = sbr.rel (%p341) target = $region40
        $region39: #{tpu_custom_call.1} parent=31 // pred_region
          %s344 = smul.u32 8, %s22
          %346 = vsyncadd %s337, 0
          %s347 = sadd.s32 %s23, %s344
          %s348 = smul.addr %s347, 8
          %s349 = scalar_lea.hbm %s3, %s348
          %s350 = sshll.u32 %s340, 4
          %s351 = int_to_ptr.vmem [resolvable:$true] %s350
          %s352 = sshll.u32 %s349, 4
          %s353 = int_to_ptr.hbm [resolvable:$true] %s352
          %358 = dma.vmem_to_hbm [thread:$0]  %s351, 1024, %s353, %s337, 128, 128, 8
        $region40: #{tpu_custom_call.1} parent=31 // pred_fallthru
          _
      $region32: #{tpu_custom_call.1} parent=5 // pred_fallthru
        _
      %p359 = scmp.le.s32.totalorder 2, %s13
      // Predicated region
      $region41: #{tpu_custom_call.1} parent=5 // pred_check
        %p360 = pneg %p359
      $region42: #{tpu_custom_call.1} parent=5 // pred_check_branch
        %362 = sbr.rel (%p360) target = $region44
      $region43: #{tpu_custom_call.1} parent=5 // pred_region
        %s363 = ssub.s32 %s13, 2
        // Predicated region
        $region45: #{tpu_custom_call.1} parent=43 // pred_check
          %p364 = pneg %p129
        $region46: #{tpu_custom_call.1} parent=43 // pred_check_branch
          %366 = sbr.rel (%p364) target = $region48
        $region47: #{tpu_custom_call.1} parent=43 // pred_region
          %s367 = sand.u32 %s114, 1
          %s368 = scalar_lea.sflag [#allocation3], %s367
          %s369 = sand.u32 %s114, 1
          %s370 = smul.addr %s369, 64
          %s371 = scalar_lea.vmem [#allocation5], %s370
          %373 = dma.done %s368, 1024
        $region48: #{tpu_custom_call.1} parent=43 // pred_fallthru
          _
      $region44: #{tpu_custom_call.1} parent=5 // pred_fallthru
        _
    $region6: #{tpu_custom_call.1} parent=1 // loop_footer
      %s17 = sadd.s32 1, %s13
    $region7: #{tpu_custom_call.1} parent=1 // loop_footer_branch
      %12 = sbr.rel target = $region3
    $region8: #{tpu_custom_call.1} parent=1 // loop_exit
      _
    %374 = vsyncpa [#allocation3], 1
    %s375 = scalar_lea.sflag [#allocation3], 1
    %376 = vsyncpa %s375, 1
    %377 = vsyncpa [#allocation4], 1
    %s378 = scalar_lea.sflag [#allocation4], 1
    %379 = vsyncpa %s378, 1

</llo_original>
